<compile_context>
chip_gen: v7x
topology: tpu7x:2x2x1
jax: 0.10.0
libtpu: 0.0.40
codegen_flags: <defaults>
</compile_context>

<pallas_src>
import jax
import jax.numpy as jnp
from jax.experimental import pallas as pl
from jax.experimental.pallas import tpu as pltpu

# ---------------------------------------------------------------------------
# "config" fields used by ActivationForward
# ---------------------------------------------------------------------------
HIDDEN_SIZE = 32
NUM_HEADS = 4
HEAD_DIM = HIDDEN_SIZE // NUM_HEADS
SEQ_LENGTH = 8            # config.seq_length
POSITION_DIM = 16         # config.position_dim  (>= seq_length)
GATE_SCALE = 100.0        # config.gate_scale
BATCH = 2
SEQ = SEQ_LENGTH

LANES = 128               # TPU lane width; everything is padded to this


# ---------------------------------------------------------------------------
# Fused Pallas kernel: c_fc -> GELU -> c_proj + gates + sigmoid gating
#   x_ref : (N, 2*LANES)  = [h_pad (ones-lane at col H) | pos_pad (ones-lane at col P)]
#   a_ref : (2*LANES, 3*LANES)  fused [c_fc(+bias row) | gate(h,pos,bias) replicated x2]
#   b_ref : (LANES,   3*LANES)  fused [c_proj          | gate(mlp)        replicated x2]
#   bp_ref: (1, LANES)          c_proj bias (zero in default config, kept general)
#   out   : (N, LANES)          gated output, lanes [0,H) valid
# ---------------------------------------------------------------------------
def _activation_forward_kernel(x_ref, a_ref, b_ref, bp_ref, out_ref):
    x = x_ref[...]                                                      # (N, 256)
    y1 = jnp.dot(x, a_ref[...], preferred_element_type=jnp.float32)     # (N, 384)
    act = jax.nn.gelu(y1[:, :LANES], approximate=True)                  # gelu_new, EUP
    y2 = jnp.dot(act, b_ref[...], preferred_element_type=jnp.float32)   # (N, 384)
    mlp = y2[:, :LANES] + bp_ref[...]                                   # (N, 128)
    # gate logits, already replicated across 128 lanes per gate
    g = jax.nn.sigmoid(y1[:, LANES:] + y2[:, LANES:])                   # (N, 256)
    out = g[:, :LANES] * x[:, :LANES] + g[:, LANES:] * mlp              # per-lane VPU only
    out_ref[...] = out.astype(out_ref.dtype)


def activation_forward(hidden, pos, packed):
    """hidden: (B, T, H); pos: (B, T, P); packed = (A, B, b_proj_pad)."""
    A, Bm, b2 = packed
    Bsz, T, H = hidden.shape
    P = pos.shape[-1]
    N = Bsz * T
    f32 = jnp.float32

    h2 = hidden.reshape(N, H).astype(f32)
    p2 = pos.reshape(N, P).astype(f32)
    ones = jnp.ones((N, 1), f32)
    # Lane layout of x: [h (H) | 1 | 0-pad] [pos (P) | 1 | 0-pad]
    # The two "1" lanes carry the c_fc bias and the (fused) gate bias through dot1.
    x = jnp.concatenate(
        [h2, ones, jnp.zeros((N, LANES - H - 1), f32),
         p2, ones, jnp.zeros((N, LANES - P - 1), f32)], axis=1)         # (N, 2*LANES)

    vmem = pl.BlockSpec(memory_space=pltpu.MemorySpace.VMEM)
    out = pl.pallas_call(
        _activation_forward_kernel,
        out_shape=jax.ShapeDtypeStruct((N, LANES), f32),
        in_specs=[vmem, vmem, vmem, vmem],
        out_specs=vmem,
    )(x, A, Bm, b2)
    return out[:, :H].reshape(Bsz, T, H).astype(hidden.dtype)


activation_forward = jax.jit(activation_forward)


# ---------------------------------------------------------------------------
# Deterministic parameter construction (mirrors ActivationForward.__init__)
# ---------------------------------------------------------------------------
def _channelmix_to_dense(w):
    # w: (HEAD_DIM, C, C) -- mixes channels independently per head-dim coord.
    # dense[c*HD+d, m*HD+d] = w[d, c, m]
    hd = w.shape[0]
    dense4 = jnp.einsum('dcm,de->cdme', w, jnp.eye(hd, dtype=w.dtype))
    return dense4.reshape(hd * w.shape[1], hd * w.shape[2])


def _headmix_to_dense(w):
    # w: (C, HEAD_DIM, HEAD_DIM) -- per-channel head_dim x head_dim matrices.
    # dense[c*HD+d, c*HD+e] = w[c, d, e]
    c = w.shape[0]
    dense4 = jnp.einsum('cde,cf->cdfe', w, jnp.eye(c, dtype=w.dtype))
    return dense4.reshape(c * w.shape[1], c * w.shape[2])


def build_params():
    """Raw (unfused) parameters, used by the pure-JAX reference."""
    f32 = jnp.float32
    # MLP.c_fc (transpose_intermediate=True): identity channel mixing, zero bias
    w_fc = jnp.tile(jnp.eye(NUM_HEADS, dtype=f32)[None], (HEAD_DIM, 1, 1))
    b_fc = jnp.zeros((1, HIDDEN_SIZE), f32)
    # MLP.c_proj: __init__ sets every per-channel matrix to eye(head_dim)
    w_proj = jnp.tile(jnp.eye(HEAD_DIM, dtype=f32)[None], (NUM_HEADS, 1, 1))
    b_proj = jnp.zeros((1, HIDDEN_SIZE), f32)

    # Gates: w = 0, u = 0, v mostly 0 with gate_scale on positions >= seq_length
    w = jnp.zeros((2, HIDDEN_SIZE), f32)
    u = jnp.zeros((2, HIDDEN_SIZE), f32)
    v = jnp.zeros((2, POSITION_DIM), f32)
    v = v.at[0, SEQ_LENGTH:POSITION_DIM].set(GATE_SCALE)
    v = v.at[1, SEQ_LENGTH:POSITION_DIM].set(-GATE_SCALE)
    gate_bias = jnp.zeros((1, 2), f32).at[0, 1].add(GATE_SCALE)  # w_bias+u_bias+v_bias

    return (_channelmix_to_dense(w_fc), b_fc,
            _headmix_to_dense(w_proj), b_proj,
            w.T, u.T, v.T, gate_bias)


def pack_params(raw):
    """Build the fused, 128-lane-padded kernel weights A, B, b_proj_pad."""
    wfc_d, bfc, wpj_d, bpj, gwT, guT, gvT, gb = raw
    f32 = jnp.float32
    H = wfc_d.shape[0]
    P = gvT.shape[0]
    HP = LANES

    # A: (2*HP, 3*HP).  Input = [h_pad | pos_pad]; output cols:
    #   [0, HP)        c_fc pre-activation (bias via ones-lane row H)
    #   [HP, 2*HP)     gate-0 logit contribution from h, pos, total bias (replicated)
    #   [2*HP, 3*HP)   gate-1 logit contribution                         (replicated)
    A = jnp.zeros((2 * HP, 3 * HP), f32)
    A = A.at[:H, :H].set(wfc_d)
    A = A.at[H, :H].set(bfc[0])
    A = A.at[:H, HP:2 * HP].set(jnp.tile(gwT[:, 0:1], (1, HP)))
    A = A.at[:H, 2 * HP:3 * HP].set(jnp.tile(gwT[:, 1:2], (1, HP)))
    A = A.at[HP:HP + P, HP:2 * HP].set(jnp.tile(gvT[:, 0:1], (1, HP)))
    A = A.at[HP:HP + P, 2 * HP:3 * HP].set(jnp.tile(gvT[:, 1:2], (1, HP)))
    gb_tot = gb[0] + bpj[0] @ guT        # fold c_proj-bias term of the gate logits
    A = A.at[HP + P, HP:2 * HP].set(gb_tot[0])
    A = A.at[HP + P, 2 * HP:3 * HP].set(gb_tot[1])

    # B: (HP, 3*HP).  Input = gelu(pre); output cols:
    #   [0, HP)        c_proj output (bias added separately in-kernel)
    #   [HP, 2*HP)     gate-0 logit contribution from mlp (replicated)
    #   [2*HP, 3*HP)   gate-1 logit contribution from mlp (replicated)
    Bm = jnp.zeros((HP, 3 * HP), f32)
    Bm = Bm.at[:H, :H].set(wpj_d)
    mg = wpj_d @ guT                     # (H, 2)
    Bm = Bm.at[:H, HP:2 * HP].set(jnp.tile(mg[:, 0:1], (1, HP)))
    Bm = Bm.at[:H, 2 * HP:3 * HP].set(jnp.tile(mg[:, 1:2], (1, HP)))

    b2 = jnp.zeros((1, HP), f32).at[0, :H].set(bpj[0])
    return A, Bm, b2


def reference(hidden, pos, raw):
    wfc_d, bfc, wpj_d, bpj, gwT, guT, gvT, gb = raw
    mlp = jax.nn.gelu(hidden @ wfc_d + bfc, approximate=True) @ wpj_d + bpj
    logits = hidden @ gwT + mlp @ guT + pos @ gvT + gb
    g = jax.nn.sigmoid(logits)
    return g[..., 0:1] * hidden + g[..., 1:2] * mlp


if __name__ == "__main__":
    key = jax.random.PRNGKey(0)
    k_h, k_p = jax.random.split(key)
    hidden_states = jax.random.normal(k_h, (BATCH, SEQ, HIDDEN_SIZE), jnp.float32)
    position_embeddings = jax.random.normal(k_p, (BATCH, SEQ, POSITION_DIM), jnp.float32)

    raw_params = build_params()
    packed_params = pack_params(raw_params)

    out = activation_forward(hidden_states, position_embeddings, packed_params)
    out = jax.block_until_ready(out)

    ref = reference(hidden_states, position_embeddings, raw_params)
    assert out.shape == (BATCH, SEQ, HIDDEN_SIZE)
    assert jnp.allclose(out, ref, atol=1e-4, rtol=1e-4), "Pallas kernel mismatch vs reference"

    print("KERNEL_OK")
</pallas_src>

<mosaic_0001>
module attributes {stable_mosaic.version = 11 : i64} {
  func.func @_activation_forward_kernel(%arg0: memref<16x256xf32, #tpu.memory_space<vmem>>, %arg1: memref<256x384xf32, #tpu.memory_space<vmem>>, %arg2: memref<128x384xf32, #tpu.memory_space<vmem>>, %arg3: memref<1x128xf32, #tpu.memory_space<vmem>>, %arg4: memref<16x128xf32, #tpu.memory_space<vmem>>) attributes {dimension_semantics = [], scalar_prefetch = 0 : i64, scratch_operands = 0 : i64, tpu.core_type = #tpu.core_type<tc>} {
    %c0 = arith.constant 0 : index
    %c0_0 = arith.constant 0 : index
    %0 = vector.load %arg0[%c0, %c0_0] : memref<16x256xf32, #tpu.memory_space<vmem>>, vector<16x256xf32>
    %c0_1 = arith.constant 0 : index
    %c0_2 = arith.constant 0 : index
    %1 = vector.load %arg1[%c0_1, %c0_2] : memref<256x384xf32, #tpu.memory_space<vmem>>, vector<256x384xf32>
    %cst = arith.constant dense<0.000000e+00> : vector<16x384xf32>
    %2 = tpu.matmul %0, %1, %cst {dimension_numbers = #tpu.dot_dimension_numbers<[1], [0], [0], [1], [0, 0, 1, 1], [], []>} : vector<16x256xf32>, vector<256x384xf32>, vector<16x384xf32> -> vector<16x384xf32>
    %3 = vector.extract_strided_slice %2 {offsets = [0, 0], sizes = [16, 128], strides = [1, 1]} : vector<16x384xf32> to vector<16x128xf32>
    %4 = arith.mulf %3, %3 : vector<16x128xf32>
    %5 = arith.mulf %3, %4 : vector<16x128xf32>
    %cst_3 = arith.constant 4.471500e-02 : f32
    %6 = vector.broadcast %cst_3 : f32 to vector<16x128xf32>
    %7 = arith.mulf %6, %5 : vector<16x128xf32>
    %8 = arith.addf %3, %7 : vector<16x128xf32>
    %cst_4 = arith.constant 0.797884583 : f32
    %9 = vector.broadcast %cst_4 : f32 to vector<16x128xf32>
    %10 = arith.mulf %9, %8 : vector<16x128xf32>
    %11 = math.tanh %10 : vector<16x128xf32>
    %cst_5 = arith.constant 1.000000e+00 : f32
    %12 = vector.broadcast %cst_5 : f32 to vector<16x128xf32>
    %13 = arith.addf %12, %11 : vector<16x128xf32>
    %cst_6 = arith.constant 5.000000e-01 : f32
    %14 = vector.broadcast %cst_6 : f32 to vector<16x128xf32>
    %15 = arith.mulf %14, %13 : vector<16x128xf32>
    %16 = arith.mulf %3, %15 : vector<16x128xf32>
    %c0_7 = arith.constant 0 : index
    %c0_8 = arith.constant 0 : index
    %17 = vector.load %arg2[%c0_7, %c0_8] : memref<128x384xf32, #tpu.memory_space<vmem>>, vector<128x384xf32>
    %cst_9 = arith.constant dense<0.000000e+00> : vector<16x384xf32>
    %18 = tpu.matmul %16, %17, %cst_9 {dimension_numbers = #tpu.dot_dimension_numbers<[1], [0], [0], [1], [0, 0, 1, 1], [], []>} : vector<16x128xf32>, vector<128x384xf32>, vector<16x384xf32> -> vector<16x384xf32>
    %19 = vector.extract_strided_slice %18 {offsets = [0, 0], sizes = [16, 128], strides = [1, 1]} : vector<16x384xf32> to vector<16x128xf32>
    %c0_10 = arith.constant 0 : index
    %c0_11 = arith.constant 0 : index
    %20 = vector.load %arg3[%c0_10, %c0_11] : memref<1x128xf32, #tpu.memory_space<vmem>>, vector<1x128xf32>
    %21 = vector.broadcast %20 : vector<1x128xf32> to vector<16x128xf32>
    %22 = arith.addf %19, %21 : vector<16x128xf32>
    %23 = vector.extract_strided_slice %2 {offsets = [0, 128], sizes = [16, 256], strides = [1, 1]} : vector<16x384xf32> to vector<16x256xf32>
    %24 = vector.extract_strided_slice %18 {offsets = [0, 128], sizes = [16, 256], strides = [1, 1]} : vector<16x384xf32> to vector<16x256xf32>
    %25 = arith.addf %23, %24 : vector<16x256xf32>
    %26 = arith.negf %25 : vector<16x256xf32>
    %27 = math.exp %26 : vector<16x256xf32>
    %cst_12 = arith.constant 1.000000e+00 : f32
    %28 = vector.broadcast %cst_12 : f32 to vector<16x256xf32>
    %29 = arith.addf %28, %27 : vector<16x256xf32>
    %30 = arith.divf %28, %29 : vector<16x256xf32>
    %31 = vector.extract_strided_slice %30 {offsets = [0, 0], sizes = [16, 128], strides = [1, 1]} : vector<16x256xf32> to vector<16x128xf32>
    %32 = vector.extract_strided_slice %0 {offsets = [0, 0], sizes = [16, 128], strides = [1, 1]} : vector<16x256xf32> to vector<16x128xf32>
    %33 = arith.mulf %31, %32 : vector<16x128xf32>
    %34 = vector.extract_strided_slice %30 {offsets = [0, 128], sizes = [16, 128], strides = [1, 1]} : vector<16x256xf32> to vector<16x128xf32>
    %35 = arith.mulf %34, %22 : vector<16x128xf32>
    %36 = arith.addf %33, %35 : vector<16x128xf32>
    %c0_13 = arith.constant 0 : index
    %c0_14 = arith.constant 0 : index
    %37 = vector.load %arg4[%c0_13, %c0_14] : memref<16x128xf32, #tpu.memory_space<vmem>>, vector<16x128xf32>
    tpu.vector_store %arg4[%c0_13, %c0_14], %36 {strides = array<i32>} : memref<16x128xf32, #tpu.memory_space<vmem>>, vector<16x128xf32>,
    return
  }
}

</mosaic_0001>

<llo_original>
// kernel: activation_forward.1
$region0: #{activation_forward.1}
  #allocation0 [shape = 'u32[]', space=smem, size = 0x4, offset = 0x4, fixed_abs, tag = 'smem constant byte address 0x4 - core index']
  #allocation1 [shape = 'u32[144,128]{1,0:T(1,128)}', space=vmem, size = 0x12000, scoped, tag = 'internal scratch']
  %s0 = inlined_call_operand.vmem [shape: f32[16,256], index: 0, kind: input, shape index: {}]
  %s1 = inlined_call_operand.hbm [shape: f32[256,384], index: 1, kind: input, shape index: {}]
  %s2 = inlined_call_operand.hbm [shape: f32[128,384], index: 2, kind: input, shape index: {}]
  %s3 = inlined_call_operand.vmem [shape: f32[1,128], index: 3, kind: input, shape index: {}]
  %s4 = inlined_call_operand.vmem [shape: f32[16,128], index: 4, kind: output, shape index: {}]
  %s5 = sld [smem:[#allocation0]]
  $region34: #{activation_forward.1} parent=0
    _
  %s7 = ssub.s32 1, %s5
  %s8 = scalar_select 0, %s7, %s5
  $region1: #{activation_forward.1} parent=0
    #allocation2 [shape = 'u8[393216]{0}', space=vmem, size = 0x60000, scoped, tag = 'input window, operand 1, single buffered']
    #allocation3 [shape = 's32[1]{0}', space=sflag, size = 0x4, scoped, tag = 'scoped memory for activation_forward.1']
    #allocation4 [shape = 'u8[196608]{0}', space=vmem, size = 0x30000, scoped, tag = 'input window, operand 2, single buffered']
    #allocation5 [shape = 's32[1]{0}', space=sflag, size = 0x4, scoped, tag = 'scoped memory for activation_forward.1']
    %9 = vsyncpa [#allocation3], 0
    %10 = vsyncpa [#allocation5], 0
    // Predicated region
    $region2: #{activation_forward.1} parent=1 // pred_check
      _
    $region3: #{activation_forward.1} parent=1 // pred_check_branch
      %12 = sbr.rel (0) target = $region5
    $region4: #{activation_forward.1} parent=1 // pred_region
      _
    $region5: #{activation_forward.1} parent=1 // pred_fallthru
      _
    // Predicated region
    $region6: #{activation_forward.1} parent=1 // pred_check
      _
    $region7: #{activation_forward.1} parent=1 // pred_check_branch
      %14 = sbr.rel (0) target = $region9
    $region8: #{activation_forward.1} parent=1 // pred_region
      %s16 = ssub.s32 12288, 12288
      %17 = vsyncadd [#allocation3], %s16
      %s18 = sshll.u32 [#allocation2], 4
      %s19 = int_to_ptr.vmem [resolvable:$true] %s18
      %24 = dma.hbm_to_vmem [thread:$0]  %s1, 12288, %s19, [#allocation3], 384, 384, 24
    $region9: #{activation_forward.1} parent=1 // pred_fallthru
      _
    // Predicated region
    $region10: #{activation_forward.1} parent=1 // pred_check
      _
    $region11: #{activation_forward.1} parent=1 // pred_check_branch
      %26 = sbr.rel (0) target = $region13
    $region12: #{activation_forward.1} parent=1 // pred_region
      %s28 = ssub.s32 6144, 6144
      %29 = vsyncadd [#allocation5], %s28
      %s30 = sshll.u32 [#allocation4], 4
      %s31 = int_to_ptr.vmem [resolvable:$true] %s30
      %36 = dma.hbm_to_vmem [thread:$0]  %s2, 6144, %s31, [#allocation5], 384, 384, 24
    $region13: #{activation_forward.1} parent=1 // pred_fallthru
      _
    // Predicated region
    $region14: #{activation_forward.1} parent=1 // pred_check
      _
    $region15: #{activation_forward.1} parent=1 // pred_check_branch
      %38 = sbr.rel (0) target = $region17
    $region16: #{activation_forward.1} parent=1 // pred_region
      _
    $region17: #{activation_forward.1} parent=1 // pred_fallthru
      _
    // Predicated region
    $region18: #{activation_forward.1} parent=1 // pred_check
      _
    $region19: #{activation_forward.1} parent=1 // pred_check_branch
      %40 = sbr.rel (0) target = $region21
    $region20: #{activation_forward.1} parent=1 // pred_region
      %41 = dma.done [#allocation3], 12288
    $region21: #{activation_forward.1} parent=1 // pred_fallthru
      _
    // Predicated region
    $region22: #{activation_forward.1} parent=1 // pred_check
      _
    $region23: #{activation_forward.1} parent=1 // pred_check_branch
      %43 = sbr.rel (0) target = $region25
    $region24: #{activation_forward.1} parent=1 // pred_region
      %44 = dma.done [#allocation5], 6144
    $region25: #{activation_forward.1} parent=1 // pred_fallthru
      _
    %v45 = vld [vmem:[%s0] sm:$0xff]
    %v46 = vld [vmem:[%s0 + $0x8] sm:$0xff]
    %v47 = vld [vmem:[%s0 + $0x10] sm:$0xff]
    %v48 = vld [vmem:[%s0 + $0x18] sm:$0xff]
    %v49 = vld [vmem:[#allocation2] sm:$0xff]
    %v50 = vld [vmem:[#allocation2 + $0x8] sm:$0xff]
    %v51 = vld [vmem:[#allocation2 + $0x10] sm:$0xff]
    %v52 = vld [vmem:[#allocation2 + $0x18] sm:$0xff]
    %v53 = vld [vmem:[#allocation2 + $0x20] sm:$0xff]
    %v54 = vld [vmem:[#allocation2 + $0x28] sm:$0xff]
    %v55 = vld [vmem:[#allocation2 + $0x30] sm:$0xff]
    %v56 = vld [vmem:[#allocation2 + $0x38] sm:$0xff]
    %v57 = vld [vmem:[#allocation2 + $0x40] sm:$0xff]
    %v58 = vld [vmem:[#allocation2 + $0x48] sm:$0xff]
    %v59 = vld [vmem:[#allocation2 + $0x50] sm:$0xff]
    %v60 = vld [vmem:[#allocation2 + $0x58] sm:$0xff]
    %v61 = vld [vmem:[#allocation2 + $0x60] sm:$0xff]
    %v62 = vld [vmem:[#allocation2 + $0x68] sm:$0xff]
    %v63 = vld [vmem:[#allocation2 + $0x70] sm:$0xff]
    %v64 = vld [vmem:[#allocation2 + $0x78] sm:$0xff]
    %v65 = vld [vmem:[#allocation2 + $0x80] sm:$0xff]
    %v66 = vld [vmem:[#allocation2 + $0x88] sm:$0xff]
    %v67 = vld [vmem:[#allocation2 + $0x90] sm:$0xff]
    %v68 = vld [vmem:[#allocation2 + $0x98] sm:$0xff]
    %v69 = vld [vmem:[#allocation2 + $0xa0] sm:$0xff]
    %v70 = vld [vmem:[#allocation2 + $0xa8] sm:$0xff]
    %v71 = vld [vmem:[#allocation2 + $0xb0] sm:$0xff]
    %v72 = vld [vmem:[#allocation2 + $0xb8] sm:$0xff]
    %v73 = vld [vmem:[#allocation2 + $0xc0] sm:$0xff]
    %v74 = vld [vmem:[#allocation2 + $0xc8] sm:$0xff]
    %v75 = vld [vmem:[#allocation2 + $0xd0] sm:$0xff]
    %v76 = vld [vmem:[#allocation2 + $0xd8] sm:$0xff]
    %v77 = vld [vmem:[#allocation2 + $0xe0] sm:$0xff]
    %v78 = vld [vmem:[#allocation2 + $0xe8] sm:$0xff]
    %v79 = vld [vmem:[#allocation2 + $0xf0] sm:$0xff]
    %v80 = vld [vmem:[#allocation2 + $0xf8] sm:$0xff]
    %v81 = vld [vmem:[#allocation2 + $0x100] sm:$0xff]
    %v82 = vld [vmem:[#allocation2 + $0x108] sm:$0xff]
    %v83 = vld [vmem:[#allocation2 + $0x110] sm:$0xff]
    %v84 = vld [vmem:[#allocation2 + $0x118] sm:$0xff]
    %v85 = vld [vmem:[#allocation2 + $0x120] sm:$0xff]
    %v86 = vld [vmem:[#allocation2 + $0x128] sm:$0xff]
    %v87 = vld [vmem:[#allocation2 + $0x130] sm:$0xff]
    %v88 = vld [vmem:[#allocation2 + $0x138] sm:$0xff]
    %v89 = vld [vmem:[#allocation2 + $0x140] sm:$0xff]
    %v90 = vld [vmem:[#allocation2 + $0x148] sm:$0xff]
    %v91 = vld [vmem:[#allocation2 + $0x150] sm:$0xff]
    %v92 = vld [vmem:[#allocation2 + $0x158] sm:$0xff]
    %v93 = vld [vmem:[#allocation2 + $0x160] sm:$0xff]
    %v94 = vld [vmem:[#allocation2 + $0x168] sm:$0xff]
    %v95 = vld [vmem:[#allocation2 + $0x170] sm:$0xff]
    %v96 = vld [vmem:[#allocation2 + $0x178] sm:$0xff]
    %v97 = vld [vmem:[#allocation2 + $0x180] sm:$0xff]
    %v98 = vld [vmem:[#allocation2 + $0x188] sm:$0xff]
    %v99 = vld [vmem:[#allocation2 + $0x190] sm:$0xff]
    %v100 = vld [vmem:[#allocation2 + $0x198] sm:$0xff]
    %v101 = vld [vmem:[#allocation2 + $0x1a0] sm:$0xff]
    %v102 = vld [vmem:[#allocation2 + $0x1a8] sm:$0xff]
    %v103 = vld [vmem:[#allocation2 + $0x1b0] sm:$0xff]
    %v104 = vld [vmem:[#allocation2 + $0x1b8] sm:$0xff]
    %v105 = vld [vmem:[#allocation2 + $0x1c0] sm:$0xff]
    %v106 = vld [vmem:[#allocation2 + $0x1c8] sm:$0xff]
    %v107 = vld [vmem:[#allocation2 + $0x1d0] sm:$0xff]
    %v108 = vld [vmem:[#allocation2 + $0x1d8] sm:$0xff]
    %v109 = vld [vmem:[#allocation2 + $0x1e0] sm:$0xff]
    %v110 = vld [vmem:[#allocation2 + $0x1e8] sm:$0xff]
    %v111 = vld [vmem:[#allocation2 + $0x1f0] sm:$0xff]
    %v112 = vld [vmem:[#allocation2 + $0x1f8] sm:$0xff]
    %v113 = vld [vmem:[#allocation2 + $0x200] sm:$0xff]
    %v114 = vld [vmem:[#allocation2 + $0x208] sm:$0xff]
    %v115 = vld [vmem:[#allocation2 + $0x210] sm:$0xff]
    %v116 = vld [vmem:[#allocation2 + $0x218] sm:$0xff]
    %v117 = vld [vmem:[#allocation2 + $0x220] sm:$0xff]
    %v118 = vld [vmem:[#allocation2 + $0x228] sm:$0xff]
    %v119 = vld [vmem:[#allocation2 + $0x230] sm:$0xff]
    %v120 = vld [vmem:[#allocation2 + $0x238] sm:$0xff]
    %v121 = vld [vmem:[#allocation2 + $0x240] sm:$0xff]
    %v122 = vld [vmem:[#allocation2 + $0x248] sm:$0xff]
    %v123 = vld [vmem:[#allocation2 + $0x250] sm:$0xff]
    %v124 = vld [vmem:[#allocation2 + $0x258] sm:$0xff]
    %v125 = vld [vmem:[#allocation2 + $0x260] sm:$0xff]
    %v126 = vld [vmem:[#allocation2 + $0x268] sm:$0xff]
    %v127 = vld [vmem:[#allocation2 + $0x270] sm:$0xff]
    %v128 = vld [vmem:[#allocation2 + $0x278] sm:$0xff]
    %v129 = vld [vmem:[#allocation2 + $0x280] sm:$0xff]
    %v130 = vld [vmem:[#allocation2 + $0x288] sm:$0xff]
    %v131 = vld [vmem:[#allocation2 + $0x290] sm:$0xff]
    %v132 = vld [vmem:[#allocation2 + $0x298] sm:$0xff]
    %v133 = vld [vmem:[#allocation2 + $0x2a0] sm:$0xff]
    %v134 = vld [vmem:[#allocation2 + $0x2a8] sm:$0xff]
    %v135 = vld [vmem:[#allocation2 + $0x2b0] sm:$0xff]
    %v136 = vld [vmem:[#allocation2 + $0x2b8] sm:$0xff]
    %v137 = vld [vmem:[#allocation2 + $0x2c0] sm:$0xff]
    %v138 = vld [vmem:[#allocation2 + $0x2c8] sm:$0xff]
    %v139 = vld [vmem:[#allocation2 + $0x2d0] sm:$0xff]
    %v140 = vld [vmem:[#allocation2 + $0x2d8] sm:$0xff]
    %v141 = vld [vmem:[#allocation2 + $0x2e0] sm:$0xff]
    %v142 = vld [vmem:[#allocation2 + $0x2e8] sm:$0xff]
    %v143 = vld [vmem:[#allocation2 + $0x2f0] sm:$0xff]
    %v144 = vld [vmem:[#allocation2 + $0x2f8] sm:$0xff]
    %145 = vmatprep.subr.mxu0 %v50
    %146 = vmatpush1.msra.mxu0 %v49
    %147 = vmatprep.subr.mxu0 %v53
    %148 = vmatpush1.msra.mxu0 %v52
    %149 = vmatprep.subr.mxu0 %v56
    %150 = vmatpush1.msra.mxu0 %v55
    %151 = vmatprep.subr.mxu0 %v59
    %152 = vmatpush1.msra.mxu0 %v58
    %153 = vmatprep.subr.mxu0 %v62
    %154 = vmatpush1.msra.mxu0 %v61
    %155 = vmatprep.subr.mxu0 %v65
    %156 = vmatpush1.msra.mxu0 %v64
    %157 = vmatprep.subr.mxu0 %v68
    %158 = vmatpush1.msra.mxu0 %v67
    %159 = vmatprep.subr.mxu0 %v71
    %160 = vmatpush1.msra.mxu0 %v70
    %161 = vmatprep.subr.mxu0 %v74
    %162 = vmatpush1.msra.mxu0 %v73
    %163 = vmatprep.subr.mxu0 %v77
    %164 = vmatpush1.msra.mxu0 %v76
    %165 = vmatprep.subr.mxu0 %v80
    %166 = vmatpush1.msra.mxu0 %v79
    %167 = vmatprep.subr.mxu0 %v83
    %168 = vmatpush1.msra.mxu0 %v82
    %169 = vmatprep.subr.mxu0 %v86
    %170 = vmatpush1.msra.mxu0 %v85
    %171 = vmatprep.subr.mxu0 %v89
    %172 = vmatpush1.msra.mxu0 %v88
    %173 = vmatprep.subr.mxu0 %v92
    %174 = vmatpush1.msra.mxu0 %v91
    %175 = vmatprep.subr.mxu0 %v95
    %176 = vmatpush1.msra.mxu0 %v94
    %177 = vmatprep.subr.mxu0 %v98
    %178 = vmatpush1.msra.mxu0 %v97
    %179 = vmatprep.subr.mxu0 %v101
    %180 = vmatpush1.msra.mxu0 %v100
    %181 = vmatprep.subr.mxu0 %v104
    %182 = vmatpush1.msra.mxu0 %v103
    %183 = vmatprep.subr.mxu0 %v107
    %184 = vmatpush1.msra.mxu0 %v106
    %185 = vmatprep.subr.mxu0 %v110
    %186 = vmatpush1.msra.mxu0 %v109
    %187 = vmatprep.subr.mxu0 %v113
    %188 = vmatpush1.msra.mxu0 %v112
    %189 = vmatprep.subr.mxu0 %v116
    %190 = vmatpush1.msra.mxu0 %v115
    %191 = vmatprep.subr.mxu0 %v119
    %192 = vmatpush1.msra.mxu0 %v118
    %193 = vmatprep.subr.mxu0 %v122
    %194 = vmatpush1.msra.mxu0 %v121
    %195 = vmatprep.subr.mxu0 %v125
    %196 = vmatpush1.msra.mxu0 %v124
    %197 = vmatprep.subr.mxu0 %v128
    %198 = vmatpush1.msra.mxu0 %v127
    %199 = vmatprep.subr.mxu0 %v131
    %200 = vmatpush1.msra.mxu0 %v130
    %201 = vmatprep.subr.mxu0 %v134
    %202 = vmatpush1.msra.mxu0 %v133
    %203 = vmatprep.subr.mxu0 %v137
    %204 = vmatpush1.msra.mxu0 %v136
    %205 = vmatprep.subr.mxu0 %v140
    %206 = vmatpush1.msra.mxu0 %v139
    %207 = vmatprep.subr.mxu0 %v143
    %208 = vmatpush1.msra.mxu0 %v142
    %209 = vmatprep.mubr.f32.mxu0 %v46
    %210 = vmatmul.mubr.f32.gmra.mrb[0].mxu0 %v45
    %v211 = vpop.f32.mrb[0].mxu0
    %v212 = vadd.f32 0.0, %v211
    %v213 = vpop.f32.mrb[0].mxu0
    %v214 = vadd.f32 0.0, %v213
    %215 = vmatprep.mubr.f32.mxu0 %v48
    %216 = vmatmul.mubr.f32.gmra.mrb[0].mxu0 %v47
    %v217 = vpop.f32.mrb[0].mxu0
    %v218 = vadd.f32 0.0, %v217
    %v219 = vpop.f32.mrb[0].mxu0
    %v220 = vadd.f32 0.0, %v219
    %221 = vdwg.mxu0
    %222 = vmatprep.subr.mxu0 0.0
    %223 = vmatpush1.msra.mxu0 %v51
    %224 = vmatprep.subr.mxu0 0.0
    %225 = vmatpush1.msra.mxu0 %v54
    %226 = vmatprep.subr.mxu0 0.0
    %227 = vmatpush1.msra.mxu0 %v57
    %228 = vmatprep.subr.mxu0 0.0
    %229 = vmatpush1.msra.mxu0 %v60
    %230 = vmatprep.subr.mxu0 0.0
    %231 = vmatpush1.msra.mxu0 %v63
    %232 = vmatprep.subr.mxu0 0.0
    %233 = vmatpush1.msra.mxu0 %v66
    %234 = vmatprep.subr.mxu0 0.0
    %235 = vmatpush1.msra.mxu0 %v69
    %236 = vmatprep.subr.mxu0 0.0
    %237 = vmatpush1.msra.mxu0 %v72
    %238 = vmatprep.subr.mxu0 0.0
    %239 = vmatpush1.msra.mxu0 %v75
    %240 = vmatprep.subr.mxu0 0.0
    %241 = vmatpush1.msra.mxu0 %v78
    %242 = vmatprep.subr.mxu0 0.0
    %243 = vmatpush1.msra.mxu0 %v81
    %244 = vmatprep.subr.mxu0 0.0
    %245 = vmatpush1.msra.mxu0 %v84
    %246 = vmatprep.subr.mxu0 0.0
    %247 = vmatpush1.msra.mxu0 %v87
    %248 = vmatprep.subr.mxu0 0.0
    %249 = vmatpush1.msra.mxu0 %v90
    %250 = vmatprep.subr.mxu0 0.0
    %251 = vmatpush1.msra.mxu0 %v93
    %252 = vmatprep.subr.mxu0 0.0
    %253 = vmatpush1.msra.mxu0 %v96
    %254 = vmatprep.subr.mxu0 0.0
    %255 = vmatpush1.msra.mxu0 %v99
    %256 = vmatprep.subr.mxu0 0.0
    %257 = vmatpush1.msra.mxu0 %v102
    %258 = vmatprep.subr.mxu0 0.0
    %259 = vmatpush1.msra.mxu0 %v105
    %260 = vmatprep.subr.mxu0 0.0
    %261 = vmatpush1.msra.mxu0 %v108
    %262 = vmatprep.subr.mxu0 0.0
    %263 = vmatpush1.msra.mxu0 %v111
    %264 = vmatprep.subr.mxu0 0.0
    %265 = vmatpush1.msra.mxu0 %v114
    %266 = vmatprep.subr.mxu0 0.0
    %267 = vmatpush1.msra.mxu0 %v117
    %268 = vmatprep.subr.mxu0 0.0
    %269 = vmatpush1.msra.mxu0 %v120
    %270 = vmatprep.subr.mxu0 0.0
    %271 = vmatpush1.msra.mxu0 %v123
    %272 = vmatprep.subr.mxu0 0.0
    %273 = vmatpush1.msra.mxu0 %v126
    %274 = vmatprep.subr.mxu0 0.0
    %275 = vmatpush1.msra.mxu0 %v129
    %276 = vmatprep.subr.mxu0 0.0
    %277 = vmatpush1.msra.mxu0 %v132
    %278 = vmatprep.subr.mxu0 0.0
    %279 = vmatpush1.msra.mxu0 %v135
    %280 = vmatprep.subr.mxu0 0.0
    %281 = vmatpush1.msra.mxu0 %v138
    %282 = vmatprep.subr.mxu0 0.0
    %283 = vmatpush1.msra.mxu0 %v141
    %284 = vmatprep.subr.mxu0 0.0
    %285 = vmatpush1.msra.mxu0 %v144
    %286 = vmatprep.mubr.f32.mxu0 %v46
    %287 = vmatmul.mubr.f32.gmra.mrb[0].mxu0 %v45
    %v288 = vpop.f32.mrb[0].mxu0
    %v289 = vadd.f32 0.0, %v288
    %v290 = vpop.f32.mrb[0].mxu0
    %291 = vmatprep.mubr.f32.mxu0 %v48
    %292 = vmatmul.mubr.f32.gmra.mrb[0].mxu0 %v47
    %v293 = vpop.f32.mrb[0].mxu0
    %v294 = vadd.f32 0.0, %v293
    %v295 = vpop.f32.mrb[0].mxu0
    %296 = vdwg.mxu0
    %v297 = vmul.f32 %v212, %v212
    %v298 = vmul.f32 %v218, %v218
    %v299 = vmul.f32 %v212, %v297
    %v300 = vmul.f32 %v218, %v298
    %v301 = vmul.f32 %v299, 0.044715
    %v302 = vmul.f32 %v300, 0.044715
    %v303 = vadd.f32 %v212, %v301
    %v304 = vadd.f32 %v218, %v302
    %v305 = vmul.f32 %v303, 0.7978846
    %v306 = vmul.f32 %v304, 0.7978846
    %v307 = vtanh.pop %v305
    %v308 = vtanh.pop %v306
    %v309 = vadd.f32 %v307, 1.0
    %v310 = vadd.f32 %v308, 1.0
    %v311 = vmul.f32 %v309, 0.5
    %v312 = vmul.f32 %v310, 0.5
    %v313 = vmul.f32 %v212, %v311
    %v314 = vmul.f32 %v218, %v312
    %v315 = vld [vmem:[#allocation4] sm:$0xff]
    %v316 = vld [vmem:[#allocation4 + $0x8] sm:$0xff]
    %v317 = vld [vmem:[#allocation4 + $0x10] sm:$0xff]
    %v318 = vld [vmem:[#allocation4 + $0x18] sm:$0xff]
    %v319 = vld [vmem:[#allocation4 + $0x20] sm:$0xff]
    %v320 = vld [vmem:[#allocation4 + $0x28] sm:$0xff]
    %v321 = vld [vmem:[#allocation4 + $0x30] sm:$0xff]
    %v322 = vld [vmem:[#allocation4 + $0x38] sm:$0xff]
    %v323 = vld [vmem:[#allocation4 + $0x40] sm:$0xff]
    %v324 = vld [vmem:[#allocation4 + $0x48] sm:$0xff]
    %v325 = vld [vmem:[#allocation4 + $0x50] sm:$0xff]
    %v326 = vld [vmem:[#allocation4 + $0x58] sm:$0xff]
    %v327 = vld [vmem:[#allocation4 + $0x60] sm:$0xff]
    %v328 = vld [vmem:[#allocation4 + $0x68] sm:$0xff]
    %v329 = vld [vmem:[#allocation4 + $0x70] sm:$0xff]
    %v330 = vld [vmem:[#allocation4 + $0x78] sm:$0xff]
    %v331 = vld [vmem:[#allocation4 + $0x80] sm:$0xff]
    %v332 = vld [vmem:[#allocation4 + $0x88] sm:$0xff]
    %v333 = vld [vmem:[#allocation4 + $0x90] sm:$0xff]
    %v334 = vld [vmem:[#allocation4 + $0x98] sm:$0xff]
    %v335 = vld [vmem:[#allocation4 + $0xa0] sm:$0xff]
    %v336 = vld [vmem:[#allocation4 + $0xa8] sm:$0xff]
    %v337 = vld [vmem:[#allocation4 + $0xb0] sm:$0xff]
    %v338 = vld [vmem:[#allocation4 + $0xb8] sm:$0xff]
    %v339 = vld [vmem:[#allocation4 + $0xc0] sm:$0xff]
    %v340 = vld [vmem:[#allocation4 + $0xc8] sm:$0xff]
    %v341 = vld [vmem:[#allocation4 + $0xd0] sm:$0xff]
    %v342 = vld [vmem:[#allocation4 + $0xd8] sm:$0xff]
    %v343 = vld [vmem:[#allocation4 + $0xe0] sm:$0xff]
    %v344 = vld [vmem:[#allocation4 + $0xe8] sm:$0xff]
    %v345 = vld [vmem:[#allocation4 + $0xf0] sm:$0xff]
    %v346 = vld [vmem:[#allocation4 + $0xf8] sm:$0xff]
    %v347 = vld [vmem:[#allocation4 + $0x100] sm:$0xff]
    %v348 = vld [vmem:[#allocation4 + $0x108] sm:$0xff]
    %v349 = vld [vmem:[#allocation4 + $0x110] sm:$0xff]
    %v350 = vld [vmem:[#allocation4 + $0x118] sm:$0xff]
    %v351 = vld [vmem:[#allocation4 + $0x120] sm:$0xff]
    %v352 = vld [vmem:[#allocation4 + $0x128] sm:$0xff]
    %v353 = vld [vmem:[#allocation4 + $0x130] sm:$0xff]
    %v354 = vld [vmem:[#allocation4 + $0x138] sm:$0xff]
    %v355 = vld [vmem:[#allocation4 + $0x140] sm:$0xff]
    %v356 = vld [vmem:[#allocation4 + $0x148] sm:$0xff]
    %v357 = vld [vmem:[#allocation4 + $0x150] sm:$0xff]
    %v358 = vld [vmem:[#allocation4 + $0x158] sm:$0xff]
    %v359 = vld [vmem:[#allocation4 + $0x160] sm:$0xff]
    %v360 = vld [vmem:[#allocation4 + $0x168] sm:$0xff]
    %v361 = vld [vmem:[#allocation4 + $0x170] sm:$0xff]
    %v362 = vld [vmem:[#allocation4 + $0x178] sm:$0xff]
    %363 = vmatprep.subr.mxu0 %v316
    %364 = vmatpush1.msra.mxu0 %v315
    %365 = vmatprep.subr.mxu0 %v319
    %366 = vmatpush1.msra.mxu0 %v318
    %367 = vmatprep.subr.mxu0 %v322
    %368 = vmatpush1.msra.mxu0 %v321
    %369 = vmatprep.subr.mxu0 %v325
    %370 = vmatpush1.msra.mxu0 %v324
    %371 = vmatprep.subr.mxu0 %v328
    %372 = vmatpush1.msra.mxu0 %v327
    %373 = vmatprep.subr.mxu0 %v331
    %374 = vmatpush1.msra.mxu0 %v330
    %375 = vmatprep.subr.mxu0 %v334
    %376 = vmatpush1.msra.mxu0 %v333
    %377 = vmatprep.subr.mxu0 %v337
    %378 = vmatpush1.msra.mxu0 %v336
    %379 = vmatprep.subr.mxu0 %v340
    %380 = vmatpush1.msra.mxu0 %v339
    %381 = vmatprep.subr.mxu0 %v343
    %382 = vmatpush1.msra.mxu0 %v342
    %383 = vmatprep.subr.mxu0 %v346
    %384 = vmatpush1.msra.mxu0 %v345
    %385 = vmatprep.subr.mxu0 %v349
    %386 = vmatpush1.msra.mxu0 %v348
    %387 = vmatprep.subr.mxu0 %v352
    %388 = vmatpush1.msra.mxu0 %v351
    %389 = vmatprep.subr.mxu0 %v355
    %390 = vmatpush1.msra.mxu0 %v354
    %391 = vmatprep.subr.mxu0 %v358
    %392 = vmatpush1.msra.mxu0 %v357
    %393 = vmatprep.subr.mxu0 %v361
    %394 = vmatpush1.msra.mxu0 %v360
    %395 = vmatprep.subr.mxu0 0.0
    %396 = vmatpush1.msra.mxu0 0.0
    %397 = vmatprep.subr.mxu0 0.0
    %398 = vmatpush1.msra.mxu0 0.0
    %399 = vmatprep.subr.mxu0 0.0
    %400 = vmatpush1.msra.mxu0 0.0
    %401 = vmatprep.subr.mxu0 0.0
    %402 = vmatpush1.msra.mxu0 0.0
    %403 = vmatprep.subr.mxu0 0.0
    %404 = vmatpush1.msra.mxu0 0.0
    %405 = vmatprep.subr.mxu0 0.0
    %406 = vmatpush1.msra.mxu0 0.0
    %407 = vmatprep.subr.mxu0 0.0
    %408 = vmatpush1.msra.mxu0 0.0
    %409 = vmatprep.subr.mxu0 0.0
    %410 = vmatpush1.msra.mxu0 0.0
    %411 = vmatprep.subr.mxu0 0.0
    %412 = vmatpush1.msra.mxu0 0.0
    %413 = vmatprep.subr.mxu0 0.0
    %414 = vmatpush1.msra.mxu0 0.0
    %415 = vmatprep.subr.mxu0 0.0
    %416 = vmatpush1.msra.mxu0 0.0
    %417 = vmatprep.subr.mxu0 0.0
    %418 = vmatpush1.msra.mxu0 0.0
    %419 = vmatprep.subr.mxu0 0.0
    %420 = vmatpush1.msra.mxu0 0.0
    %421 = vmatprep.subr.mxu0 0.0
    %422 = vmatpush1.msra.mxu0 0.0
    %423 = vmatprep.subr.mxu0 0.0
    %424 = vmatpush1.msra.mxu0 0.0
    %425 = vmatprep.subr.mxu0 0.0
    %426 = vmatpush1.msra.mxu0 0.0
    %427 = vmatprep.mubr.f32.mxu0 0.0
    %428 = vmatmul.mubr.f32.gmra.mrb[0].mxu0 %v313
    %v429 = vpop.f32.mrb[0].mxu0
    %v430 = vadd.f32 0.0, %v429
    %v431 = vpop.f32.mrb[0].mxu0
    %v432 = vadd.f32 0.0, %v431
    %433 = vmatprep.mubr.f32.mxu0 0.0
    %434 = vmatmul.mubr.f32.gmra.mrb[0].mxu0 %v314
    %v435 = vpop.f32.mrb[0].mxu0
    %v436 = vadd.f32 0.0, %v435
    %v437 = vpop.f32.mrb[0].mxu0
    %v438 = vadd.f32 0.0, %v437
    %439 = vdwg.mxu0
    %440 = vmatprep.subr.mxu0 0.0
    %441 = vmatpush1.msra.mxu0 %v317
    %442 = vmatprep.subr.mxu0 0.0
    %443 = vmatpush1.msra.mxu0 %v320
    %444 = vmatprep.subr.mxu0 0.0
    %445 = vmatpush1.msra.mxu0 %v323
    %446 = vmatprep.subr.mxu0 0.0
    %447 = vmatpush1.msra.mxu0 %v326
    %448 = vmatprep.subr.mxu0 0.0
    %449 = vmatpush1.msra.mxu0 %v329
    %450 = vmatprep.subr.mxu0 0.0
    %451 = vmatpush1.msra.mxu0 %v332
    %452 = vmatprep.subr.mxu0 0.0
    %453 = vmatpush1.msra.mxu0 %v335
    %454 = vmatprep.subr.mxu0 0.0
    %455 = vmatpush1.msra.mxu0 %v338
    %456 = vmatprep.subr.mxu0 0.0
    %457 = vmatpush1.msra.mxu0 %v341
    %458 = vmatprep.subr.mxu0 0.0
    %459 = vmatpush1.msra.mxu0 %v344
    %460 = vmatprep.subr.mxu0 0.0
    %461 = vmatpush1.msra.mxu0 %v347
    %462 = vmatprep.subr.mxu0 0.0
    %463 = vmatpush1.msra.mxu0 %v350
    %464 = vmatprep.subr.mxu0 0.0
    %465 = vmatpush1.msra.mxu0 %v353
    %466 = vmatprep.subr.mxu0 0.0
    %467 = vmatpush1.msra.mxu0 %v356
    %468 = vmatprep.subr.mxu0 0.0
    %469 = vmatpush1.msra.mxu0 %v359
    %470 = vmatprep.subr.mxu0 0.0
    %471 = vmatpush1.msra.mxu0 %v362
    %472 = vmatprep.subr.mxu0 0.0
    %473 = vmatpush1.msra.mxu0 0.0
    %474 = vmatprep.subr.mxu0 0.0
    %475 = vmatpush1.msra.mxu0 0.0
    %476 = vmatprep.subr.mxu0 0.0
    %477 = vmatpush1.msra.mxu0 0.0
    %478 = vmatprep.subr.mxu0 0.0
    %479 = vmatpush1.msra.mxu0 0.0
    %480 = vmatprep.subr.mxu0 0.0
    %481 = vmatpush1.msra.mxu0 0.0
    %482 = vmatprep.subr.mxu0 0.0
    %483 = vmatpush1.msra.mxu0 0.0
    %484 = vmatprep.subr.mxu0 0.0
    %485 = vmatpush1.msra.mxu0 0.0
    %486 = vmatprep.subr.mxu0 0.0
    %487 = vmatpush1.msra.mxu0 0.0
    %488 = vmatprep.subr.mxu0 0.0
    %489 = vmatpush1.msra.mxu0 0.0
    %490 = vmatprep.subr.mxu0 0.0
    %491 = vmatpush1.msra.mxu0 0.0
    %492 = vmatprep.subr.mxu0 0.0
    %493 = vmatpush1.msra.mxu0 0.0
    %494 = vmatprep.subr.mxu0 0.0
    %495 = vmatpush1.msra.mxu0 0.0
    %496 = vmatprep.subr.mxu0 0.0
    %497 = vmatpush1.msra.mxu0 0.0
    %498 = vmatprep.subr.mxu0 0.0
    %499 = vmatpush1.msra.mxu0 0.0
    %500 = vmatprep.subr.mxu0 0.0
    %501 = vmatpush1.msra.mxu0 0.0
    %502 = vmatprep.subr.mxu0 0.0
    %503 = vmatpush1.msra.mxu0 0.0
    %504 = vmatprep.mubr.f32.mxu0 0.0
    %505 = vmatmul.mubr.f32.gmra.mrb[0].mxu0 %v313
    %v506 = vpop.f32.mrb[0].mxu0
    %v507 = vadd.f32 0.0, %v506
    %v508 = vpop.f32.mrb[0].mxu0
    %509 = vmatprep.mubr.f32.mxu0 0.0
    %510 = vmatmul.mubr.f32.gmra.mrb[0].mxu0 %v314
    %v511 = vpop.f32.mrb[0].mxu0
    %v512 = vadd.f32 0.0, %v511
    %v513 = vpop.f32.mrb[0].mxu0
    %514 = vdwg.mxu0
    %v515 = vld [vmem:[%s3] sm:$0x1]
    %v517 = vlaneseq
    %v518 = vshrl.u32 %v517, 7
    %v519 = vsub.s32 0, %v518
    %v520 = vrot.slane %v515, %v519
    %v522 = vadd.f32 %v430, %v520
    %v523 = vadd.f32 %v436, %v520
    %v524 = vadd.f32 %v214, %v432
    %v525 = vadd.f32 %v289, %v507
    %v526 = vadd.f32 %v220, %v438
    %v527 = vadd.f32 %v294, %v512
    %v528 = vxor.u32 %v524, 2147483648
    %v529 = vxor.u32 %v525, 2147483648
    %v530 = vxor.u32 %v526, 2147483648
    %v531 = vxor.u32 %v527, 2147483648
    %v532 = vmul.f32 %v528, 1.442695
    %v533 = vpow.pop %v532
    %v534 = vmul.f32 %v529, 1.442695
    %v535 = vpow.pop %v534
    %v536 = vmul.f32 %v530, 1.442695
    %v537 = vpow.pop %v536
    %v538 = vmul.f32 %v531, 1.442695
    %v539 = vpow.pop %v538
    %v540 = vadd.f32 %v533, 1.0
    %v541 = vadd.f32 %v535, 1.0
    %v542 = vadd.f32 %v537, 1.0
    %v543 = vadd.f32 %v539, 1.0
    %v544 = vrcp.pop %v540
    %v545 = vmul.f32 1.0, %v544
    %v546 = vrcp.pop %v541
    %v547 = vmul.f32 1.0, %v546
    %v548 = vrcp.pop %v542
    %v549 = vmul.f32 1.0, %v548
    %v550 = vrcp.pop %v543
    %v551 = vmul.f32 1.0, %v550
    %v552 = vmul.f32 %v545, %v45
    %v553 = vmul.f32 %v549, %v47
    %v554 = vmul.f32 %v547, %v522
    %v555 = vmul.f32 %v551, %v523
    %v556 = vadd.f32 %v552, %v554
    %v557 = vadd.f32 %v553, %v555
    %558 = vst [vmem:[%s4] sm:$0xff] %v556
    %559 = vst [vmem:[%s4 + $0x8] sm:$0xff] %v557
    // Predicated region
    $region26: #{activation_forward.1} parent=1 // pred_check
      _
    $region27: #{activation_forward.1} parent=1 // pred_check_branch
      %561 = sbr.rel (0) target = $region29
    $region28: #{activation_forward.1} parent=1 // pred_region
      _
    $region29: #{activation_forward.1} parent=1 // pred_fallthru
      _
    // Predicated region
    $region30: #{activation_forward.1} parent=1 // pred_check
      _
    $region31: #{activation_forward.1} parent=1 // pred_check_branch
      %563 = sbr.rel (0) target = $region33
    $region32: #{activation_forward.1} parent=1 // pred_region
      _
    $region33: #{activation_forward.1} parent=1 // pred_fallthru
      _
    %564 = vsyncpa [#allocation3], 1
    %565 = vsyncpa [#allocation5], 1

</llo_original>
